<compile_context>
chip_gen: v5e
topology: v5e:2x2
jax: 0.10.0
libtpu: 0.0.40
codegen_flags: <defaults>
</compile_context>

<pallas_src>
import functools

import jax
import jax.numpy as jnp
from jax.experimental import pallas as pl
from jax.experimental.pallas import tpu as pltpu

ALPHA = 0.25
GAMMA = 2.0

LANES = 128
MAX_BLOCK_ROWS = 4096    # (4096,128) f32 = 2 MiB / input / pipeline buffer


def _cdiv(a, b):
    return -(-a // b)


def _round_up(a, b):
    return _cdiv(a, b) * b


def _sublane_multiple(dtype):
    # 32-bit -> 8 sublanes, 16-bit -> 16, 8-bit -> 32 (packed layouts).
    return {4: 8, 2: 16, 1: 32}.get(jnp.dtype(dtype).itemsize, 8)


def _num_tensorcores():
    """Best-effort TensorCore count of the local device.

    Width of the 'parallel' partial axis (megacore sharding).  1 on v5e/v6e
    (single TC), 2 on megacore generations (v4/v5p) and v7x.  Any value is
    correct; a wrong guess only costs one masked overhang grid step.
    """
    try:
        dev = jax.devices()[0]
        n = getattr(dev, "num_cores", None)
        if isinstance(n, int) and 1 <= n <= 16:
            return n
        kind = str(getattr(dev, "device_kind", "")).lower()
        if any(tag in kind for tag in ("v7", "v4", "v5p")):
            return 2
    except Exception:
        pass
    return 1


def _focal_elementwise(x, t, *, alpha, gamma, hard_labels, approx):
    """Per-element focal loss in f32.  x = logits, t = targets (same shape)."""
    # One shared EUP transcendental: e = exp(-|x|).
    e = jnp.exp(-jnp.abs(x))
    # Numerically stable BCE-with-logits: max(x,0) - x*t + log1p(exp(-|x|)).
    bce = jnp.maximum(x, 0.0) - x * t + jnp.log1p(e)
    # EUP reciprocal (frees VALU slots vs. a generic f32 divide).
    inv = pl.reciprocal(1.0 + e, approx=approx)
    if hard_labels:
        # t strictly in {0,1}:  1 - p_t = sigmoid(x*(1-2t))  -> sign-select.
        agree = (t >= 0.5) == (x >= 0.0)
        one_m_pt = jnp.where(agree, e * inv, inv)
    else:
        p = jnp.where(x >= 0.0, inv, e * inv)          # sigmoid(x)
        one_m_pt = p + t * (1.0 - 2.0 * p)             # 1 - p_t (folded)
    alpha_t = t * (2.0 * alpha - 1.0) + (1.0 - alpha)  # folded
    if gamma == 2.0:
        focal = one_m_pt * one_m_pt                    # avoid pow / log(0) edge case
    else:
        focal = one_m_pt ** gamma
    return alpha_t * focal * bce


def _focal_sum_kernel(x_ref, t_ref, out_ref, acc_ref, *,
                      n, alpha, gamma, hard_labels, approx):
    c = pl.program_id(0)          # partial index ("parallel", one per TensorCore)
    j = pl.program_id(1)          # reduction step ("arbitrary", last grid axis)
    inner = pl.num_programs(1)
    blk_rows, lanes = x_ref.shape
    acc_rows = acc_ref.shape[0]

    @pl.when(j == 0)
    def _():
        acc_ref[...] = jnp.zeros_like(acc_ref)

    loss = _focal_elementwise(
        x_ref[...].astype(jnp.float32), t_ref[...].astype(jnp.float32),
        alpha=alpha, gamma=gamma, hard_labels=hard_labels, approx=approx)

    blk_elems = blk_rows * lanes
    # Logical flat offset of this step (int32 arithmetic; assumes n < 2**31).
    block_start = (c * inner + j) * blk_elems
    is_full = block_start + blk_elems <= n

    def fold(v):  # (blk_rows, lanes) -> (acc_rows, lanes) partial tree-sum
        return v.reshape(blk_rows // acc_rows, acc_rows, lanes).sum(axis=0)

    @pl.when(is_full)                       # full interior block: no mask at all
    def _():
        acc_ref[...] += fold(loss)

    @pl.when(jnp.logical_not(is_full))      # ragged / clipped / overhang block
    def _():
        row = jax.lax.broadcasted_iota(jnp.int32, (blk_rows, lanes), 0)
        col = jax.lax.broadcasted_iota(jnp.int32, (blk_rows, lanes), 1)
        idx = block_start + row * lanes + col
        # where-select: NaN/Inf-safe against stale edge reads of clipped blocks.
        acc_ref[...] += fold(jnp.where(idx < n, loss, 0.0))

    @pl.when(j == inner - 1)
    def _():
        # Fold the small accumulator down to one (8,128) partial tile; the tiny
        # cross-lane sum happens in the XLA epilogue.
        out_ref[0] = acc_ref[...].reshape(acc_rows // 8, 8, lanes).sum(axis=0)


def _focal_map_kernel(x_ref, t_ref, o_ref, *, alpha, gamma, hard_labels, approx):
    o_ref[...] = _focal_elementwise(
        x_ref[...].astype(jnp.float32), t_ref[...].astype(jnp.float32),
        alpha=alpha, gamma=gamma, hard_labels=hard_labels, approx=approx)


def focal_loss(inputs, targets, alpha=ALPHA, gamma=GAMMA, reduction="mean", *,
               hard_labels=False, approx_reciprocal=True,
               max_block_rows=MAX_BLOCK_ROWS):
    """Focal loss of `inputs` (logits) vs `targets`.

    reduction: 'mean' | 'sum' | anything else -> per-element loss (PyTorch else-branch).
    hard_labels=True enables the {0,1}-targets fast path (wrong for soft targets).
    approx_reciprocal=True uses the EUP approximate reciprocal for sigmoid.
    """
    assert inputs.shape == targets.shape, "inputs/targets shape mismatch"
    orig_shape = inputs.shape
    n = int(inputs.size)
    if n == 0:  # matches torch: mean over empty -> nan, sum -> 0
        if reduction == "mean":
            return jnp.float32(float("nan"))
        if reduction == "sum":
            return jnp.float32(0.0)
        return jnp.zeros(orig_shape, inputs.dtype)

    x = inputs.reshape(-1)      # keep native dtype; kernel upcasts to f32
    t = targets.reshape(-1)

    # Only lane-align (multiple of 128).  Tile/block raggedness, clipped edge
    # blocks and overhang grid steps are all handled by the in-kernel mask, so
    # tile-misaligned sizes no longer pay a full-array pad copy.
    pad = (-n) % LANES
    if pad:
        x = jnp.pad(x, (0, pad))
        t = jnp.pad(t, (0, pad))
    rows = (n + pad) // LANES

    sub = max(_sublane_multiple(x.dtype), _sublane_multiple(t.dtype))
    block_rows = _round_up(min(max_block_rows, rows), sub)
    total_blocks = _cdiv(rows, block_rows)

    x = x.reshape(rows, LANES)
    t = t.reshape(rows, LANES)

    elem_kwargs = dict(alpha=float(alpha), gamma=float(gamma),
                       hard_labels=bool(hard_labels),
                       approx=bool(approx_reciprocal))

    f32_blk = block_rows * LANES * 4
    in_blk = block_rows * LANES * (x.dtype.itemsize + t.dtype.itemsize)

    if reduction not in ("mean", "sum"):
        # Elementwise ('none') path: simple map kernel, 1-D grid over blocks.
        vmem_limit = int(min(56 << 20,
                             max(32 << 20,
                                 2 * (in_blk + f32_blk) + 12 * f32_blk + (4 << 20))))
        loss = pl.pallas_call(
            functools.partial(_focal_map_kernel, **elem_kwargs),
            out_shape=jax.ShapeDtypeStruct((rows, LANES), jnp.float32),
            grid_spec=pltpu.PrefetchScalarGridSpec(
                num_scalar_prefetch=0,
                grid=(total_blocks,),
                in_specs=[pl.BlockSpec((block_rows, LANES), lambda i: (i, 0)),
                          pl.BlockSpec((block_rows, LANES), lambda i: (i, 0))],
                out_specs=pl.BlockSpec((block_rows, LANES), lambda i: (i, 0))),
            compiler_params=pltpu.CompilerParams(
                dimension_semantics=("parallel",),
                vmem_limit_bytes=vmem_limit),
        )(x, t)
        return loss.reshape(-1)[:n].reshape(orig_shape).astype(inputs.dtype)

    # Reduction path: 2-D grid (per-TC partials "parallel", reduction "arbitrary").
    num_partials = max(1, min(_num_tensorcores(), total_blocks))
    inner = _cdiv(total_blocks, num_partials)
    acc_rows = 64 if block_rows % 64 == 0 else 8       # small VMEM accumulator

    def in_map(c, j):
        # Overhanging steps of the last partial re-read the final valid block;
        # their contribution is masked to zero inside the kernel.
        return (jnp.minimum(c * inner + j, total_blocks - 1), 0)

    # Explicit scoped-VMEM budget: 2x double-buffered inputs + elementwise
    # temporaries + headroom.  >= 32 MiB so v5e's 16 MiB default is raised
    # explicitly (never silently exceeded); <= 56 MiB, under every generation's
    # physical VMEM (64 MiB/TC on v7x, 128 MiB on v5e/v6e).
    vmem_limit = int(min(56 << 20,
                         max(32 << 20, 2 * in_blk + 12 * f32_blk + (4 << 20))))

    partials = pl.pallas_call(
        functools.partial(_focal_sum_kernel, n=n, **elem_kwargs),
        out_shape=jax.ShapeDtypeStruct((num_partials, 8, LANES), jnp.float32),
        grid_spec=pltpu.PrefetchScalarGridSpec(
            num_scalar_prefetch=0,
            grid=(num_partials, inner),
            in_specs=[pl.BlockSpec((block_rows, LANES), in_map),
                      pl.BlockSpec((block_rows, LANES), in_map)],
            out_specs=pl.BlockSpec((1, 8, LANES), lambda c, j: (c, 0, 0)),
            scratch_shapes=[pltpu.VMEM((acc_rows, LANES), jnp.float32)]),
        compiler_params=pltpu.CompilerParams(
            dimension_semantics=("parallel", "arbitrary"),
            vmem_limit_bytes=vmem_limit),
    )(x, t)

    total = jnp.sum(partials)
    if reduction == "sum":
        return total
    return total / n


class FocalLoss:
    """Forward-only mirror of the PyTorch nn.Module."""

    def __init__(self, alpha=ALPHA, gamma=GAMMA, reduction="mean"):
        self.alpha, self.gamma, self.reduction = alpha, gamma, reduction

    def __call__(self, inputs, targets):
        return focal_loss(inputs, targets, self.alpha, self.gamma, self.reduction)


def _ref_focal_loss(inputs, targets, alpha=ALPHA, gamma=GAMMA, reduction="mean"):
    x = inputs.astype(jnp.float32)
    t = targets.astype(jnp.float32)
    bce = jnp.maximum(x, 0.0) - x * t + jnp.log1p(jnp.exp(-jnp.abs(x)))
    p = jax.nn.sigmoid(x)
    p_t = t * p + (1 - t) * (1 - p)
    alpha_t = t * alpha + (1 - t) * (1 - alpha)
    loss = alpha_t * (1 - p_t) ** gamma * bce
    if reduction == "mean":
        return loss.mean()
    if reduction == "sum":
        return loss.sum()
    return loss


if __name__ == "__main__":
    key = jax.random.PRNGKey(0)
    k = jax.random.split(key, 6)

    # 1) Primary NCHW case (lane-aligned -> zero-copy wrapper path), mean reduction.
    shape = (2, 4, 16, 16)
    x1 = jax.random.normal(k[0], shape, dtype=jnp.float32) * 2.0
    t1 = jax.random.bernoulli(k[1], 0.3, shape).astype(jnp.float32)
    ref1 = _ref_focal_loss(x1, t1)
    out1 = jax.block_until_ready(focal_loss(x1, t1))                 # approx-EUP sigmoid
    assert jnp.allclose(out1, ref1, rtol=1e-2, atol=1e-5), (out1, ref1)
    out1p = jax.block_until_ready(focal_loss(x1, t1, approx_reciprocal=False))
    assert jnp.allclose(out1p, ref1, rtol=1e-4, atol=1e-6), (out1p, ref1)
    out1h = jax.block_until_ready(focal_loss(x1, t1, hard_labels=True))
    assert jnp.allclose(out1h, ref1, rtol=1e-2, atol=1e-5), (out1h, ref1)

    # 2) Ragged case (1530 elems, not lane-aligned): lane pad + masked/clipped block.
    shape2 = (2, 3, 15, 17)
    x2 = jax.random.normal(k[2], shape2, dtype=jnp.float32) * 2.0
    t2 = jax.random.bernoulli(k[3], 0.3, shape2).astype(jnp.float32)
    ref2 = _ref_focal_loss(x2, t2)
    out2 = jax.block_until_ready(focal_loss(x2, t2, approx_reciprocal=False))
    assert jnp.allclose(out2, ref2, rtol=1e-4, atol=1e-6), (out2, ref2)

    # 3) Multi-block / multi-partial case (tiny block size), sum reduction:
    #    exercises the parallel partial axis, multi-step accumulation and the
    #    clamped overhang grid step.
    shape3 = (2, 5, 16, 16)
    x3 = jax.random.normal(k[4], shape3, dtype=jnp.float32) * 2.0
    t3 = jax.random.bernoulli(k[5], 0.3, shape3).astype(jnp.float32)
    ref3 = _ref_focal_loss(x3, t3, reduction="sum")
    out3 = jax.block_until_ready(
        focal_loss(x3, t3, reduction="sum", max_block_rows=8,
                   approx_reciprocal=False))
    assert jnp.allclose(out3, ref3, rtol=1e-4, atol=1e-4), (out3, ref3)

    # 4) reduction='none' elementwise kernel on the ragged shape (precise path).
    ref4 = _ref_focal_loss(x2, t2, reduction="none")
    out4 = jax.block_until_ready(
        focal_loss(x2, t2, reduction="none", approx_reciprocal=False))
    assert out4.shape == shape2 and out4.dtype == x2.dtype
    assert jnp.allclose(out4, ref4, rtol=1e-4, atol=1e-6), float(jnp.abs(out4 - ref4).max())

    # 5) Module-style wrapper.
    out5 = jax.block_until_ready(FocalLoss()(x1, t1))
    assert jnp.allclose(out5, ref1, rtol=1e-2, atol=1e-5), (out5, ref1)

    print("KERNEL_OK")
</pallas_src>

<mosaic_0001>
module attributes {stable_mosaic.version = 11 : i64} {
  func.func @_focal_sum_kernel(%arg0: i32, %arg1: i32, %arg2: memref<16x128xf32, #tpu.memory_space<vmem>>, %arg3: memref<16x128xf32, #tpu.memory_space<vmem>>, %arg4: memref<1x8x128xf32, #tpu.memory_space<vmem>>, %arg5: memref<8x128xf32, #tpu.memory_space<vmem>>) attributes {dimension_semantics = [#tpu.dimension_semantics<parallel>, #tpu.dimension_semantics<arbitrary>], iteration_bounds = array<i64: 1, 1>, scalar_prefetch = 0 : i64, scratch_operands = 1 : i64, tpu.core_type = #tpu.core_type<tc>, window_params = [{transform_indices = @transform_0, window_bounds = array<i64: 16, 128>}, {transform_indices = @transform_1, window_bounds = array<i64: 16, 128>}, {transform_indices = @transform_2, window_bounds = array<i64: 1, 8, 128>}]} {
    %c0_i32 = arith.constant 0 : i32
    %0 = arith.cmpi eq, %arg1, %c0_i32 : i32
    %1 = arith.extui %0 : i1 to i32
    %c0_i32_0 = arith.constant 0 : i32
    %2 = arith.cmpi ne, %1, %c0_i32_0 : i32
    scf.if %2 {
      %cst_17 = arith.constant 0.000000e+00 : f32
      %48 = vector.broadcast %cst_17 : f32 to vector<8x128xf32>
      %c0_18 = arith.constant 0 : index
      %c0_19 = arith.constant 0 : index
      %49 = vector.load %arg5[%c0_18, %c0_19] : memref<8x128xf32, #tpu.memory_space<vmem>>, vector<8x128xf32>
      tpu.vector_store %arg5[%c0_18, %c0_19], %48 {strides = array<i32>} : memref<8x128xf32, #tpu.memory_space<vmem>>, vector<8x128xf32>,
    } else {
    }
    %c0 = arith.constant 0 : index
    %c0_1 = arith.constant 0 : index
    %3 = vector.load %arg2[%c0, %c0_1] : memref<16x128xf32, #tpu.memory_space<vmem>>, vector<16x128xf32>
    %c0_2 = arith.constant 0 : index
    %c0_3 = arith.constant 0 : index
    %4 = vector.load %arg3[%c0_2, %c0_3] : memref<16x128xf32, #tpu.memory_space<vmem>>, vector<16x128xf32>
    %5 = math.absf %3 : vector<16x128xf32>
    %cst = arith.constant 0.000000e+00 : f32
    %6 = vector.broadcast %cst : f32 to vector<16x128xf32>
    %7 = arith.subf %6, %5 : vector<16x128xf32>
    %8 = math.exp %7 : vector<16x128xf32>
    %cst_4 = arith.constant 0.000000e+00 : f32
    %9 = vector.broadcast %cst_4 : f32 to vector<16x128xf32>
    %10 = arith.maximumf %3, %9 : vector<16x128xf32>
    %11 = arith.mulf %3, %4 : vector<16x128xf32>
    %12 = arith.subf %10, %11 : vector<16x128xf32>
    %13 = math.log1p %8 : vector<16x128xf32>
    %14 = arith.addf %12, %13 : vector<16x128xf32>
    %cst_5 = arith.constant 1.000000e+00 : f32
    %15 = vector.broadcast %cst_5 : f32 to vector<16x128xf32>
    %16 = arith.addf %15, %8 : vector<16x128xf32>
    %17 = tpu.reciprocal %16 {approx = true} : vector<16x128xf32> -> vector<16x128xf32>
    %cst_6 = arith.constant 0.000000e+00 : f32
    %18 = vector.broadcast %cst_6 : f32 to vector<16x128xf32>
    %19 = arith.cmpf oge, %3, %18 : vector<16x128xf32>
    %20 = arith.mulf %8, %17 : vector<16x128xf32>
    %21 = arith.select %19, %17, %20 : vector<16x128xi1>, vector<16x128xf32>
    %cst_7 = arith.constant 2.000000e+00 : f32
    %22 = vector.broadcast %cst_7 : f32 to vector<16x128xf32>
    %23 = arith.mulf %22, %21 : vector<16x128xf32>
    %cst_8 = arith.constant 1.000000e+00 : f32
    %24 = vector.broadcast %cst_8 : f32 to vector<16x128xf32>
    %25 = arith.subf %24, %23 : vector<16x128xf32>
    %26 = arith.mulf %4, %25 : vector<16x128xf32>
    %27 = arith.addf %21, %26 : vector<16x128xf32>
    %cst_9 = arith.constant -5.000000e-01 : f32
    %28 = vector.broadcast %cst_9 : f32 to vector<16x128xf32>
    %29 = arith.mulf %4, %28 : vector<16x128xf32>
    %cst_10 = arith.constant 7.500000e-01 : f32
    %30 = vector.broadcast %cst_10 : f32 to vector<16x128xf32>
    %31 = arith.addf %29, %30 : vector<16x128xf32>
    %32 = arith.mulf %27, %27 : vector<16x128xf32>
    %33 = arith.mulf %31, %32 : vector<16x128xf32>
    %34 = arith.mulf %33, %14 : vector<16x128xf32>
    %c1_i32 = arith.constant 1 : i32
    %35 = arith.muli %arg0, %c1_i32 : i32
    %36 = arith.addi %35, %arg1 : i32
    %c2048_i32 = arith.constant 2048 : i32
    %37 = arith.muli %36, %c2048_i32 : i32
    %c2048_i32_11 = arith.constant 2048 : i32
    %38 = arith.addi %37, %c2048_i32_11 : i32
    %c2048_i32_12 = arith.constant 2048 : i32
    %39 = arith.cmpi sle, %38, %c2048_i32_12 : i32
    %40 = arith.extui %39 : i1 to i32
    %c0_i32_13 = arith.constant 0 : i32
    %41 = arith.cmpi ne, %40, %c0_i32_13 : i32
    scf.if %41 {
      %c0_17 = arith.constant 0 : index
      %c0_18 = arith.constant 0 : index
      %48 = vector.load %arg5[%c0_17, %c0_18] : memref<8x128xf32, #tpu.memory_space<vmem>>, vector<8x128xf32>
      %49 = vector.shape_cast %34 : vector<16x128xf32> to vector<2x8x128xf32>
      %cst_19 = arith.constant dense<0.000000e+00> : vector<8x128xf32>
      %50 = vector.multi_reduction <add>, %49, %cst_19 [0] : vector<2x8x128xf32> to vector<8x128xf32>
      %51 = arith.addf %48, %50 : vector<8x128xf32>
      %c0_20 = arith.constant 0 : index
      %c0_21 = arith.constant 0 : index
      %52 = vector.load %arg5[%c0_20, %c0_21] : memref<8x128xf32, #tpu.memory_space<vmem>>, vector<8x128xf32>
      tpu.vector_store %arg5[%c0_20, %c0_21], %51 {strides = array<i32>} : memref<8x128xf32, #tpu.memory_space<vmem>>, vector<8x128xf32>,
    } else {
    }
    %true = arith.constant true
    %42 = arith.xori %39, %true : i1
    %43 = arith.extui %42 : i1 to i32
    %c0_i32_14 = arith.constant 0 : i32
    %44 = arith.cmpi ne, %43, %c0_i32_14 : i32
    scf.if %44 {
      %48 = tpu.iota {dimensions = array<i32: 0>} : vector<16x128xi32>
      %49 = tpu.iota {dimensions = array<i32: 1>} : vector<16x128xi32>
      %c128_i32 = arith.constant 128 : i32
      %50 = vector.broadcast %c128_i32 : i32 to vector<16x128xi32>
      %51 = arith.muli %48, %50 : vector<16x128xi32>
      %52 = vector.broadcast %37 : i32 to vector<16x128xi32>
      %53 = arith.addi %52, %51 : vector<16x128xi32>
      %54 = arith.addi %53, %49 : vector<16x128xi32>
      %c0_17 = arith.constant 0 : index
      %c0_18 = arith.constant 0 : index
      %55 = vector.load %arg5[%c0_17, %c0_18] : memref<8x128xf32, #tpu.memory_space<vmem>>, vector<8x128xf32>
      %c2048_i32_19 = arith.constant 2048 : i32
      %56 = vector.broadcast %c2048_i32_19 : i32 to vector<16x128xi32>
      %57 = arith.cmpi slt, %54, %56 : vector<16x128xi32>
      %cst_20 = arith.constant 0.000000e+00 : f32
      %58 = vector.broadcast %cst_20 : f32 to vector<16x128xf32>
      %59 = arith.select %57, %34, %58 : vector<16x128xi1>, vector<16x128xf32>
      %60 = vector.shape_cast %59 : vector<16x128xf32> to vector<2x8x128xf32>
      %cst_21 = arith.constant dense<0.000000e+00> : vector<8x128xf32>
      %61 = vector.multi_reduction <add>, %60, %cst_21 [0] : vector<2x8x128xf32> to vector<8x128xf32>
      %62 = arith.addf %55, %61 : vector<8x128xf32>
      %c0_22 = arith.constant 0 : index
      %c0_23 = arith.constant 0 : index
      %63 = vector.load %arg5[%c0_22, %c0_23] : memref<8x128xf32, #tpu.memory_space<vmem>>, vector<8x128xf32>
      tpu.vector_store %arg5[%c0_22, %c0_23], %62 {strides = array<i32>} : memref<8x128xf32, #tpu.memory_space<vmem>>, vector<8x128xf32>,
    } else {
    }
    %c0_i32_15 = arith.constant 0 : i32
    %45 = arith.cmpi eq, %arg1, %c0_i32_15 : i32
    %46 = arith.extui %45 : i1 to i32
    %c0_i32_16 = arith.constant 0 : i32
    %47 = arith.cmpi ne, %46, %c0_i32_16 : i32
    scf.if %47 {
      %c0_17 = arith.constant 0 : index
      %c0_18 = arith.constant 0 : index
      %48 = vector.load %arg5[%c0_17, %c0_18] : memref<8x128xf32, #tpu.memory_space<vmem>>, vector<8x128xf32>
      %49 = vector.shape_cast %48 : vector<8x128xf32> to vector<1x8x128xf32>
      %cst_19 = arith.constant dense<0.000000e+00> : vector<8x128xf32>
      %50 = vector.multi_reduction <add>, %49, %cst_19 [0] : vector<1x8x128xf32> to vector<8x128xf32>
      %c0_20 = arith.constant 0 : index
      %c0_21 = arith.constant 0 : index
      %c0_22 = arith.constant 0 : index
      %51 = vector.load %arg4[%c0_20, %c0_21, %c0_22] : memref<1x8x128xf32, #tpu.memory_space<vmem>>, vector<1x8x128xf32>
      %52 = vector.shape_cast %51 : vector<1x8x128xf32> to vector<8x128xf32>
      %53 = vector.shape_cast %50 : vector<8x128xf32> to vector<1x8x128xf32>
      tpu.vector_store %arg4[%c0_20, %c0_21, %c0_22], %53 {strides = array<i32>} : memref<1x8x128xf32, #tpu.memory_space<vmem>>, vector<1x8x128xf32>,
    } else {
    }
    return
  }
  func.func @transform_0(%arg0: i32, %arg1: i32) -> (i32, i32) {
    %c1_i32 = arith.constant 1 : i32
    %0 = arith.muli %arg0, %c1_i32 : i32
    %1 = arith.addi %0, %arg1 : i32
    %c0_i32 = arith.constant 0 : i32
    %2 = arith.minsi %1, %c0_i32 : i32
    %c0_i32_0 = arith.constant 0 : i32
    %c0_i32_1 = arith.constant 0 : i32
    return %2, %c0_i32_0 : i32, i32
  }
  func.func @transform_1(%arg0: i32, %arg1: i32) -> (i32, i32) {
    %c1_i32 = arith.constant 1 : i32
    %0 = arith.muli %arg0, %c1_i32 : i32
    %1 = arith.addi %0, %arg1 : i32
    %c0_i32 = arith.constant 0 : i32
    %2 = arith.minsi %1, %c0_i32 : i32
    %c0_i32_0 = arith.constant 0 : i32
    %c0_i32_1 = arith.constant 0 : i32
    return %2, %c0_i32_0 : i32, i32
  }
  func.func @transform_2(%arg0: i32, %arg1: i32) -> (i32, i32, i32) {
    %c0_i32 = arith.constant 0 : i32
    %c0_i32_0 = arith.constant 0 : i32
    %c0_i32_1 = arith.constant 0 : i32
    return %arg0, %c0_i32, %c0_i32_0 : i32, i32, i32
  }
}

</mosaic_0001>

<llo_original>
// kernel: tpu_custom_call.1
$region0: #{tpu_custom_call.1}
  #allocation0 [shape = 'u32[]', space=smem, size = 0x4, offset = 0x4, fixed_abs, tag = 'smem constant byte address 0x4 - core index']
  #allocation1 [shape = 'u32[72,128]{1,0:T(1,128)}', space=vmem, size = 0x9000, scoped, tag = 'internal scratch']
  #allocation2 [shape = 'f32[8,128]{1,0:T(8,128)}', space=vmem, size = 0x1000, scoped, tag = 'scratch operand']
  %s0 = inlined_call_operand.hbm [shape: f32[16,128], index: 0, kind: input, shape index: {}]
  %s1 = inlined_call_operand.hbm [shape: f32[16,128], index: 1, kind: input, shape index: {}]
  %s2 = inlined_call_operand.hbm [shape: f32[1,8,128], index: 2, kind: output, shape index: {}]
  %s3 = sld [smem:[#allocation0]]
  $region42: #{tpu_custom_call.1} parent=0
    _
  %s5 = ssub.s32 1, %s3
  %s6 = scalar_select 0, %s5, %s3
  $region1: #{tpu_custom_call.1} parent=0
    #allocation3 [shape = 'u8[8192]{0}', space=vmem, size = 0x2000, scoped, tag = 'input window, operand 0, single buffered']
    #allocation4 [shape = 's32[1]{0}', space=sflag, size = 0x4, scoped, tag = 'scoped memory for tpu_custom_call.1']
    #allocation5 [shape = 's32[1]{0}', space=sflag, size = 0x4, scoped, tag = 'scoped memory for tpu_custom_call.1']
    #allocation6 [shape = 'u8[8192]{0}', space=vmem, size = 0x2000, scoped, tag = 'input window, operand 1, single buffered']
    #allocation7 [shape = 's32[1]{0}', space=sflag, size = 0x4, scoped, tag = 'scoped memory for tpu_custom_call.1']
    #allocation8 [shape = 'u8[4096]{0}', space=vmem, size = 0x1000, scoped, tag = 'output window, operand 0, single buffered']
    %7 = vsyncpa [#allocation4], 0
    %8 = vsyncpa [#allocation7], 0
    %9 = vsyncpa [#allocation5], 0
    // Predicated region
    $region2: #{tpu_custom_call.1} parent=1 // pred_check
      _
    $region3: #{tpu_custom_call.1} parent=1 // pred_check_branch
      %11 = sbr.rel (0) target = $region5
    $region4: #{tpu_custom_call.1} parent=1 // pred_region
      %s12 = sadd.s32 0, 0
      %p13 = scmp.lt.s32.totalorder %s12, 0
      %s14 = scalar_select %p13, %s12, 0
      %s15 = smul.u32 2, %s14
      %17 = vsyncadd [#allocation4], 0
      %s18 = smul.addr %s15, 8
      %s19 = scalar_lea.hbm %s0, %s18
      %s20 = sshll.u32 %s19, 4
      %s21 = int_to_ptr.hbm [resolvable:$true] %s20
      %s22 = sshll.u32 [#allocation3], 4
      %s23 = int_to_ptr.vmem [resolvable:$true] %s22
      %28 = dma.hbm_to_vmem [thread:$0]  %s21, 256, %s23, [#allocation4], 128, 128, 8
    $region5: #{tpu_custom_call.1} parent=1 // pred_fallthru
      _
    // Predicated region
    $region6: #{tpu_custom_call.1} parent=1 // pred_check
      _
    $region7: #{tpu_custom_call.1} parent=1 // pred_check_branch
      %30 = sbr.rel (0) target = $region9
    $region8: #{tpu_custom_call.1} parent=1 // pred_region
      %s31 = sadd.s32 0, 0
      %p32 = scmp.lt.s32.totalorder %s31, 0
      %s33 = scalar_select %p32, %s31, 0
      %s34 = smul.u32 2, %s33
      %36 = vsyncadd [#allocation7], 0
      %s37 = smul.addr %s34, 8
      %s38 = scalar_lea.hbm %s1, %s37
      %s39 = sshll.u32 %s38, 4
      %s40 = int_to_ptr.hbm [resolvable:$true] %s39
      %s41 = sshll.u32 [#allocation6], 4
      %s42 = int_to_ptr.vmem [resolvable:$true] %s41
      %47 = dma.hbm_to_vmem [thread:$0]  %s40, 256, %s42, [#allocation7], 128, 128, 8
    $region9: #{tpu_custom_call.1} parent=1 // pred_fallthru
      _
    // Predicated region
    $region10: #{tpu_custom_call.1} parent=1 // pred_check
      _
    $region11: #{tpu_custom_call.1} parent=1 // pred_check_branch
      %49 = sbr.rel (0) target = $region13
    $region12: #{tpu_custom_call.1} parent=1 // pred_region
      %51 = dma.done [#allocation4], 256
    $region13: #{tpu_custom_call.1} parent=1 // pred_fallthru
      _
    // Predicated region
    $region14: #{tpu_custom_call.1} parent=1 // pred_check
      _
    $region15: #{tpu_custom_call.1} parent=1 // pred_check_branch
      %53 = sbr.rel (0) target = $region17
    $region16: #{tpu_custom_call.1} parent=1 // pred_region
      %55 = dma.done [#allocation7], 256
    $region17: #{tpu_custom_call.1} parent=1 // pred_fallthru
      _
    %s56 = sadd.s32 0, 0
    %p57 = scmp.lt.s32.totalorder %s56, 0
    %s58 = scalar_select %p57, %s56, 0
    %s59 = smul.u32 2, %s58
    %s60 = sadd.s32 0, 0
    %p61 = scmp.lt.s32.totalorder %s60, 0
    %s62 = scalar_select %p61, %s60, 0
    %s63 = smul.u32 2, %s62
    %p64 = scmp.eq.s32.totalorder 0, 0
    // Predicated region
    $region18: #{tpu_custom_call.1} parent=1 // pred_check
      %p65 = pneg %p64
    $region19: #{tpu_custom_call.1} parent=1 // pred_check_branch
      %67 = sbr.rel (%p65) target = $region21
    $region20: #{tpu_custom_call.1} parent=1 // pred_region
      %68 = vst [vmem:[#allocation2] sm:$0xff] 0.0
    $region21: #{tpu_custom_call.1} parent=1 // pred_fallthru
      _
    %v69 = vld [vmem:[#allocation3] sm:$0xff]
    %v70 = vld [vmem:[#allocation3 + $0x8] sm:$0xff]
    %v71 = vld [vmem:[#allocation6] sm:$0xff]
    %v72 = vld [vmem:[#allocation6 + $0x8] sm:$0xff]
    %v73 = vand.u32 2147483647, %v69
    %v74 = vand.u32 2147483647, %v70
    %v75 = vsub.f32 0.0, %v73
    %v76 = vsub.f32 0.0, %v74
    %v77 = vmul.f32 %v75, 1.442695
    %v78 = vpow.pop %v77
    %v79 = vmul.f32 %v76, 1.442695
    %v80 = vpow.pop %v79
    %v81 = vmax.f32 %v69, 0.0
    %v82 = vmax.f32 %v70, 0.0
    %v83 = vmul.f32 %v69, %v71
    %v84 = vmul.f32 %v70, %v72
    %v85 = vsub.f32 %v81, %v83
    %v86 = vsub.f32 %v82, %v84
    %v87 = vadd.f32 %v78, 1.0
    %v88 = vlog2.pop %v87
    %v89 = vmul.f32 %v88, 0.6931472
    %v90 = vmul.f32 -0.5, %v78
    %v91 = vadd.f32 %v90, 1.0
    %v92 = vmul.f32 %v91, %v78
    %v93 = vand.u32 2147483647, %v78
    %vm94 = vcmp.lt.f32.partialorder %v93, 0.0004427343
    %v95 = vsel %vm94, %v92, %v89
    %v96 = vadd.f32 %v80, 1.0
    %v97 = vlog2.pop %v96
    %v98 = vmul.f32 %v97, 0.6931472
    %v99 = vmul.f32 -0.5, %v80
    %v100 = vadd.f32 %v99, 1.0
    %v101 = vmul.f32 %v100, %v80
    %v102 = vand.u32 2147483647, %v80
    %vm103 = vcmp.lt.f32.partialorder %v102, 0.0004427343
    %v104 = vsel %vm103, %v101, %v98
    %v105 = vadd.f32 %v85, %v95
    %v106 = vadd.f32 %v86, %v104
    %v107 = vadd.f32 %v78, 1.0
    %v108 = vadd.f32 %v80, 1.0
    %v109 = vrcp.pop %v107
    %v110 = vrcp.pop %v108
    %vm111 = vcmp.ge.f32.partialorder %v69, 0.0
    %vm112 = vcmp.ge.f32.partialorder %v70, 0.0
    %v113 = vmul.f32 %v78, %v109
    %v114 = vmul.f32 %v80, %v110
    %v115 = vsel %vm111, %v109, %v113
    %v116 = vsel %vm112, %v110, %v114
    %v117 = vmul.f32 %v115, 2.0
    %v118 = vmul.f32 %v116, 2.0
    %v119 = vsub.f32 1.0, %v117
    %v120 = vsub.f32 1.0, %v118
    %v121 = vmul.f32 %v71, %v119
    %v122 = vmul.f32 %v72, %v120
    %v123 = vadd.f32 %v115, %v121
    %v124 = vadd.f32 %v116, %v122
    %v125 = vmul.f32 %v71, -0.5
    %v126 = vmul.f32 %v72, -0.5
    %v127 = vadd.f32 %v125, 0.75
    %v128 = vadd.f32 %v126, 0.75
    %v129 = vmul.f32 %v123, %v123
    %v130 = vmul.f32 %v124, %v124
    %v131 = vmul.f32 %v127, %v129
    %v132 = vmul.f32 %v128, %v130
    %v133 = vmul.f32 %v131, %v105
    %v134 = vmul.f32 %v132, %v106
    %s135 = sadd.s32 0, 0
    %s136 = smul.u32 %s135, 2048
    %s137 = sadd.s32 %s136, 2048
    %p138 = scmp.le.s32.totalorder %s137, 2048
    // Predicated region
    $region22: #{tpu_custom_call.1} parent=1 // pred_check
      %p139 = pneg %p138
    $region23: #{tpu_custom_call.1} parent=1 // pred_check_branch
      %141 = sbr.rel (%p139) target = $region25
    $region24: #{tpu_custom_call.1} parent=1 // pred_region
      %v142 = vld [vmem:[#allocation2] sm:$0xff]
      %v143 = vadd.f32 %v133, %v134
      %v144 = vadd.f32 %v142, %v143
      %145 = vst [vmem:[#allocation2] sm:$0xff] %v144
    $region25: #{tpu_custom_call.1} parent=1 // pred_fallthru
      _
    %p146 = scmp.gt.s32.totalorder %s137, 2048
    // Predicated region
    $region26: #{tpu_custom_call.1} parent=1 // pred_check
      %p147 = pneg %p146
    $region27: #{tpu_custom_call.1} parent=1 // pred_check_branch
      %149 = sbr.rel (%p147) target = $region29
    $region28: #{tpu_custom_call.1} parent=1 // pred_region
      %v150 = vlaneseq
      %v151 = vshrl.u32 %v150, 7
      %v152 = vadd.s32 %v151, 8
      %v153 = vlaneseq
      %v154 = vand.u32 %v153, 127
      %v155 = vmul.u32 %v151, 128
      %v156 = vmul.u32 %v152, 128
      %v157 = vstv %s136
      %v158 = vadd.s32 %v157, %v155
      %v159 = vadd.s32 %v157, %v156
      %v160 = vadd.s32 %v158, %v154
      %v161 = vadd.s32 %v159, %v154
      %v162 = vld [vmem:[#allocation2] sm:$0xff]
      %vm163 = vcmp.lt.s32.totalorder %v160, 2048
      %vm164 = vcmp.lt.s32.totalorder %v161, 2048
      %v165 = vsel %vm163, %v133, 0.0
      %v166 = vsel %vm164, %v134, 0.0
      %v167 = vadd.f32 %v165, %v166
      %v168 = vadd.f32 %v162, %v167
      %169 = vst [vmem:[#allocation2] sm:$0xff] %v168
    $region29: #{tpu_custom_call.1} parent=1 // pred_fallthru
      _
    // Predicated region
    $region30: #{tpu_custom_call.1} parent=1 // pred_check
      %p170 = pneg %p64
    $region31: #{tpu_custom_call.1} parent=1 // pred_check_branch
      %172 = sbr.rel (%p170) target = $region33
    $region32: #{tpu_custom_call.1} parent=1 // pred_region
      %v173 = vld [vmem:[#allocation2] sm:$0xff]
      %v174 = vadd.f32 %v173, 0.0
      %175 = vst [vmem:[#allocation8] sm:$0xff] %v174
    $region33: #{tpu_custom_call.1} parent=1 // pred_fallthru
      _
    // Predicated region
    $region34: #{tpu_custom_call.1} parent=1 // pred_check
      _
    $region35: #{tpu_custom_call.1} parent=1 // pred_check_branch
      %177 = sbr.rel (0) target = $region37
    $region36: #{tpu_custom_call.1} parent=1 // pred_region
      %179 = vsyncadd [#allocation5], 0
      %s181 = sshll.u32 [#allocation8], 4
      %s182 = int_to_ptr.vmem [resolvable:$true] %s181
      %s183 = sshll.u32 %s2, 4
      %s184 = int_to_ptr.hbm [resolvable:$true] %s183
      %186 = dma.vmem_to_hbm [thread:$0]  %s182, 128, %s184, [#allocation5]
    $region37: #{tpu_custom_call.1} parent=1 // pred_fallthru
      _
    // Predicated region
    $region38: #{tpu_custom_call.1} parent=1 // pred_check
      _
    $region39: #{tpu_custom_call.1} parent=1 // pred_check_branch
      %188 = sbr.rel (0) target = $region41
    $region40: #{tpu_custom_call.1} parent=1 // pred_region
      %190 = dma.done [#allocation5], 128
    $region41: #{tpu_custom_call.1} parent=1 // pred_fallthru
      _
    %191 = vsyncpa [#allocation4], 1
    %192 = vsyncpa [#allocation7], 1
    %193 = vsyncpa [#allocation5], 1

</llo_original>
